<compile_context>
chip_gen: v5e
topology: v5e:2x2
jax: 0.10.0
libtpu: 0.0.40
codegen_flags: <defaults>
</compile_context>

<pallas_src>
import functools

import jax
import jax.numpy as jnp
from jax.experimental import pallas as pl
from jax.experimental.pallas import tpu as pltpu

P_DROP = 0.2
_KEEP_SCALE = 1.0 / (1.0 - P_DROP)
_DROP_THRESHOLD = int(round(P_DROP * (1 << 32)))  # uint32 threshold: bits < thr -> drop


def _dropout_net_kernel(x_ref,
                        w_in_pi, b_in_pi, w_h_pi, b_h_pi, w_out_pi, b_out_pi,
                        w_in_vf, b_in_vf, w_h_vf, b_h_vf, w_out_vf, b_out_vf,
                        *rest, hidden_layers, training):
    """Both DropoutNet branches on a (tb, F) batch tile, fully on-chip."""
    if training:
        pi_bits_ref, vf_bits_ref, pi_out_ref, vf_out_ref = rest
    else:
        pi_out_ref, vf_out_ref = rest
        pi_bits_ref = vf_bits_ref = None

    # Shared input load; bf16 operands for the MXU, f32 accumulation.
    x_bf16 = x_ref[...].astype(jnp.bfloat16)
    thr = jnp.uint32(_DROP_THRESHOLD)
    scale = jnp.float32(_KEEP_SCALE)

    def run_branch(w_in, b_in, w_h, b_h, w_out, b_out, bits_ref, out_ref):
        def dropout(h, layer_idx):
            if not training:
                return h  # PyTorch eval(): Dropout is identity
            keep = bits_ref[layer_idx] >= thr          # uint32 compare, VPU only
            return jnp.where(keep, h, 0.0) * scale     # inverted dropout

        # *_in: Linear -> ReLU -> Dropout
        h = jnp.dot(x_bf16, w_in[...], preferred_element_type=jnp.float32) + b_in[...]
        h = jnp.maximum(h, 0.0)
        h = dropout(h, 0)

        # hidden layers: Linear -> ReLU -> Dropout (statically unrolled)
        for l in range(hidden_layers):
            h = jnp.dot(h.astype(jnp.bfloat16), w_h[l],
                        preferred_element_type=jnp.float32) + b_h[l]
            h = jnp.maximum(h, 0.0)
            h = dropout(h, l + 1)

        # *_out: Linear -> ReLU
        out = jnp.dot(h.astype(jnp.bfloat16), w_out[...],
                      preferred_element_type=jnp.float32) + b_out[...]
        out_ref[...] = jnp.maximum(out, 0.0).astype(out_ref.dtype)

    run_branch(w_in_pi, b_in_pi, w_h_pi, b_h_pi, w_out_pi, b_out_pi,
               pi_bits_ref, pi_out_ref)
    run_branch(w_in_vf, b_in_vf, w_h_vf, b_h_vf, w_out_vf, b_out_vf,
               vf_bits_ref, vf_out_ref)


def _pick_batch_tile(batch):
    """Largest multiple-of-8 divisor of batch (capped at 256), else whole batch."""
    for cand in (256, 128, 64, 32, 16, 8):
        if batch % cand == 0:
            return cand
    return batch


def dropout_net_forward(features, params, key=None, *, training=False):
    """Equivalent of DropoutNet.forward -> (latent_pi, latent_vf)."""
    B, F = features.shape
    p_pi, p_vf = params["policy"], params["value"]
    H = p_pi["w_in"].shape[1]
    L = p_pi["w_h"].shape[0]
    Ppi = p_pi["w_out"].shape[1]
    Pvf = p_vf["w_out"].shape[1]

    tb = _pick_batch_tile(B)
    grid = (B // tb,)

    def _rep2(i):  # replicated 2-D operand (weights / biases)
        return (0, 0)

    def _rep3(i):  # replicated stacked 3-D operand
        return (0, 0, 0)

    weight_specs = [
        pl.BlockSpec((F, H), _rep2),          # w_in
        pl.BlockSpec((1, H), _rep2),          # b_in
        pl.BlockSpec((L, H, H), _rep3),       # stacked hidden W
        pl.BlockSpec((L, 1, H), _rep3),       # stacked hidden b
    ]
    in_specs = [pl.BlockSpec((tb, F), lambda i: (i, 0))]                     # x tile
    in_specs += weight_specs + [pl.BlockSpec((H, Ppi), _rep2),
                                pl.BlockSpec((1, Ppi), _rep2)]               # policy
    in_specs += weight_specs + [pl.BlockSpec((H, Pvf), _rep2),
                                pl.BlockSpec((1, Pvf), _rep2)]               # value

    args = [features,
            p_pi["w_in"], p_pi["b_in"], p_pi["w_h"], p_pi["b_h"],
            p_pi["w_out"], p_pi["b_out"],
            p_vf["w_in"], p_vf["b_in"], p_vf["w_h"], p_vf["b_h"],
            p_vf["w_out"], p_vf["b_out"]]

    bits_bytes = 0
    if training:
        if key is None:
            key = jax.random.PRNGKey(0)
        k_pi, k_vf = jax.random.split(key)
        n_drop = 1 + L
        pi_bits = jax.random.bits(k_pi, (n_drop, B, H), jnp.uint32)
        vf_bits = jax.random.bits(k_vf, (n_drop, B, H), jnp.uint32)
        bits_spec = pl.BlockSpec((n_drop, tb, H), lambda i: (0, i, 0))
        in_specs += [bits_spec, bits_spec]
        args += [pi_bits, vf_bits]
        bits_bytes = 2 * n_drop * B * H * 4

    out_shape = (jax.ShapeDtypeStruct((B, Ppi), features.dtype),
                 jax.ShapeDtypeStruct((B, Pvf), features.dtype))
    out_specs = (pl.BlockSpec((tb, Ppi), lambda i: (i, 0)),
                 pl.BlockSpec((tb, Pvf), lambda i: (i, 0)))

    flops = 2 * B * ((F * H + L * H * H + H * Ppi) + (F * H + L * H * H + H * Pvf))
    weight_bytes = 2 * (F * H + L * H * H) * 2 + (H * Ppi + H * Pvf) * 2 \
                   + (2 * (1 + L) * H + Ppi + Pvf) * 4
    bytes_accessed = B * F * 4 + weight_bytes + B * (Ppi + Pvf) * 4 + bits_bytes

    kernel = functools.partial(_dropout_net_kernel,
                               hidden_layers=L, training=training)

    pi, vf = pl.pallas_call(
        kernel,
        out_shape=out_shape,
        grid=grid,
        in_specs=in_specs,
        out_specs=out_specs,
        compiler_params=pltpu.CompilerParams(
            # No carried state between batch tiles -> safe to shard across
            # v7x's two TensorCores; neutral on v5e/v6e.
            dimension_semantics=("parallel",)),
        cost_estimate=pl.CostEstimate(flops=flops, transcendentals=0,
                                      bytes_accessed=bytes_accessed),
    )(*args)
    return pi, vf


# ----------------------------- parameter setup -----------------------------

def _init_linear(key, fan_in, fan_out):
    """PyTorch nn.Linear default init: U(-1/sqrt(fan_in), 1/sqrt(fan_in))."""
    kw, kb = jax.random.split(key)
    bound = 1.0 / jnp.sqrt(fan_in)
    w = jax.random.uniform(kw, (fan_in, fan_out), jnp.float32, -bound, bound)
    b = jax.random.uniform(kb, (1, fan_out), jnp.float32, -bound, bound)
    # Weights in bf16 (native MXU operand dtype, halves weight DMA); biases f32.
    return w.astype(jnp.bfloat16), b


def init_dropout_net_params(key, feature_dim, last_layer_dim_pi=128,
                            last_layer_dim_vf=128, hidden_size=128,
                            hidden_layers=3):
    params = {}
    keys = jax.random.split(key, 2 * (2 + hidden_layers))
    ki = iter(keys)
    for branch, out_dim in (("policy", last_layer_dim_pi), ("value", last_layer_dim_vf)):
        w_in, b_in = _init_linear(next(ki), feature_dim, hidden_size)
        wh, bh = [], []
        for _ in range(hidden_layers):
            w, b = _init_linear(next(ki), hidden_size, hidden_size)
            wh.append(w)
            bh.append(b)
        w_out, b_out = _init_linear(next(ki), hidden_size, out_dim)
        params[branch] = dict(
            w_in=w_in, b_in=b_in,
            w_h=jnp.stack(wh, 0), b_h=jnp.stack(bh, 0),
            w_out=w_out, b_out=b_out,
        )
    return params


def _branch_ref(x, p):
    """Pure-JAX reference (eval mode), same bf16-operand / f32-accum recipe."""
    h = jnp.dot(x.astype(jnp.bfloat16), p["w_in"],
                preferred_element_type=jnp.float32) + p["b_in"]
    h = jnp.maximum(h, 0.0)
    for l in range(p["w_h"].shape[0]):
        h = jnp.dot(h.astype(jnp.bfloat16), p["w_h"][l],
                    preferred_element_type=jnp.float32) + p["b_h"][l]
        h = jnp.maximum(h, 0.0)
    out = jnp.dot(h.astype(jnp.bfloat16), p["w_out"],
                  preferred_element_type=jnp.float32) + p["b_out"]
    return jnp.maximum(out, 0.0)


if __name__ == "__main__":
    key = jax.random.PRNGKey(0)
    k_params, k_x, k_drop = jax.random.split(key, 3)

    batch = 8
    feature_dim = 32
    hidden_size = 128
    hidden_layers = 3
    last_layer_dim_pi = 128
    last_layer_dim_vf = 128

    params = init_dropout_net_params(
        k_params, feature_dim, last_layer_dim_pi, last_layer_dim_vf,
        hidden_size, hidden_layers)
    features = jax.random.normal(k_x, (batch, feature_dim), jnp.float32)

    # Eval-mode (deterministic): dropout is the identity, check vs pure-JAX ref.
    pi, vf = dropout_net_forward(features, params, training=False)
    jax.block_until_ready((pi, vf))
    pi_ref = _branch_ref(features, params["policy"])
    vf_ref = _branch_ref(features, params["value"])
    assert pi.shape == (batch, last_layer_dim_pi)
    assert vf.shape == (batch, last_layer_dim_vf)
    assert jnp.allclose(pi, pi_ref, atol=5e-3, rtol=5e-3)
    assert jnp.allclose(vf, vf_ref, atol=5e-3, rtol=5e-3)

    # Train-mode: inverted dropout (p=0.2) via integer-threshold compare on
    # pre-generated uint32 bits (not bit-reproducible vs torch's RNG).
    pi_t, vf_t = dropout_net_forward(features, params, key=k_drop, training=True)
    jax.block_until_ready((pi_t, vf_t))
    assert pi_t.shape == (batch, last_layer_dim_pi)
    assert vf_t.shape == (batch, last_layer_dim_vf)
    assert bool(jnp.all(jnp.isfinite(pi_t))) and bool(jnp.all(jnp.isfinite(vf_t)))
    assert bool(jnp.all(pi_t >= 0.0)) and bool(jnp.all(vf_t >= 0.0))  # ReLU outputs

    print("KERNEL_OK")
</pallas_src>

<mosaic_0001>
module attributes {stable_mosaic.version = 11 : i64} {
  func.func @_dropout_net_kernel(%arg0: i32, %arg1: memref<8x32xf32, #tpu.memory_space<vmem>>, %arg2: memref<32x128xbf16, #tpu.memory_space<vmem>>, %arg3: memref<1x128xf32, #tpu.memory_space<vmem>>, %arg4: memref<3x128x128xbf16, #tpu.memory_space<vmem>>, %arg5: memref<3x1x128xf32, #tpu.memory_space<vmem>>, %arg6: memref<128x128xbf16, #tpu.memory_space<vmem>>, %arg7: memref<1x128xf32, #tpu.memory_space<vmem>>, %arg8: memref<32x128xbf16, #tpu.memory_space<vmem>>, %arg9: memref<1x128xf32, #tpu.memory_space<vmem>>, %arg10: memref<3x128x128xbf16, #tpu.memory_space<vmem>>, %arg11: memref<3x1x128xf32, #tpu.memory_space<vmem>>, %arg12: memref<128x128xbf16, #tpu.memory_space<vmem>>, %arg13: memref<1x128xf32, #tpu.memory_space<vmem>>, %arg14: memref<8x128xf32, #tpu.memory_space<vmem>>, %arg15: memref<8x128xf32, #tpu.memory_space<vmem>>) attributes {dimension_semantics = [#tpu.dimension_semantics<parallel>], iteration_bounds = array<i64: 1>, scalar_prefetch = 0 : i64, scratch_operands = 0 : i64, tpu.core_type = #tpu.core_type<tc>, window_params = [{transform_indices = @transform_0, window_bounds = array<i64: 8, 32>}, {pipeline_mode = #tpu.pipeline_mode<synchronous>, transform_indices = @transform_1, window_bounds = array<i64: 32, 128>}, {pipeline_mode = #tpu.pipeline_mode<synchronous>, transform_indices = @transform_2, window_bounds = array<i64: 1, 128>}, {pipeline_mode = #tpu.pipeline_mode<synchronous>, transform_indices = @transform_3, window_bounds = array<i64: 3, 128, 128>}, {pipeline_mode = #tpu.pipeline_mode<synchronous>, transform_indices = @transform_4, window_bounds = array<i64: 3, 1, 128>}, {pipeline_mode = #tpu.pipeline_mode<synchronous>, transform_indices = @transform_5, window_bounds = array<i64: 128, 128>}, {pipeline_mode = #tpu.pipeline_mode<synchronous>, transform_indices = @transform_6, window_bounds = array<i64: 1, 128>}, {pipeline_mode = #tpu.pipeline_mode<synchronous>, transform_indices = @transform_7, window_bounds = array<i64: 32, 128>}, {pipeline_mode = #tpu.pipeline_mode<synchronous>, transform_indices = @transform_8, window_bounds = array<i64: 1, 128>}, {pipeline_mode = #tpu.pipeline_mode<synchronous>, transform_indices = @transform_9, window_bounds = array<i64: 3, 128, 128>}, {pipeline_mode = #tpu.pipeline_mode<synchronous>, transform_indices = @transform_10, window_bounds = array<i64: 3, 1, 128>}, {pipeline_mode = #tpu.pipeline_mode<synchronous>, transform_indices = @transform_11, window_bounds = array<i64: 128, 128>}, {pipeline_mode = #tpu.pipeline_mode<synchronous>, transform_indices = @transform_12, window_bounds = array<i64: 1, 128>}, {transform_indices = @transform_13, window_bounds = array<i64: 8, 128>}, {transform_indices = @transform_14, window_bounds = array<i64: 8, 128>}]} {
    %c0 = arith.constant 0 : index
    %c0_0 = arith.constant 0 : index
    %0 = vector.load %arg1[%c0, %c0_0] : memref<8x32xf32, #tpu.memory_space<vmem>>, vector<8x32xf32>
    %1 = arith.truncf %0 : vector<8x32xf32> to vector<8x32xbf16>
    %c0_1 = arith.constant 0 : index
    %c0_2 = arith.constant 0 : index
    %2 = vector.load %arg2[%c0_1, %c0_2] : memref<32x128xbf16, #tpu.memory_space<vmem>>, vector<32x128xbf16>
    %cst = arith.constant dense<0.000000e+00> : vector<8x128xf32>
    %3 = tpu.matmul %1, %2, %cst {dimension_numbers = #tpu.dot_dimension_numbers<[1], [0], [0], [1], [0, 0, 1, 1], [], []>} : vector<8x32xbf16>, vector<32x128xbf16>, vector<8x128xf32> -> vector<8x128xf32>
    %c0_3 = arith.constant 0 : index
    %c0_4 = arith.constant 0 : index
    %4 = vector.load %arg3[%c0_3, %c0_4] : memref<1x128xf32, #tpu.memory_space<vmem>>, vector<1x128xf32>
    %5 = vector.broadcast %4 : vector<1x128xf32> to vector<8x128xf32>
    %6 = arith.addf %3, %5 : vector<8x128xf32>
    %cst_5 = arith.constant 0.000000e+00 : f32
    %7 = vector.broadcast %cst_5 : f32 to vector<8x128xf32>
    %8 = arith.maximumf %6, %7 : vector<8x128xf32>
    %9 = arith.truncf %8 : vector<8x128xf32> to vector<8x128xbf16>
    %c0_6 = arith.constant 0 : index
    %c0_7 = arith.constant 0 : index
    %c0_8 = arith.constant 0 : index
    %10 = vector.load %arg4[%c0_6, %c0_7, %c0_8] : memref<3x128x128xbf16, #tpu.memory_space<vmem>>, vector<1x128x128xbf16>
    %11 = vector.shape_cast %10 : vector<1x128x128xbf16> to vector<128x128xbf16>
    %cst_9 = arith.constant dense<0.000000e+00> : vector<8x128xf32>
    %12 = tpu.matmul %9, %11, %cst_9 {dimension_numbers = #tpu.dot_dimension_numbers<[1], [0], [0], [1], [0, 0, 1, 1], [], []>} : vector<8x128xbf16>, vector<128x128xbf16>, vector<8x128xf32> -> vector<8x128xf32>
    %c0_10 = arith.constant 0 : index
    %c0_11 = arith.constant 0 : index
    %c0_12 = arith.constant 0 : index
    %13 = vector.load %arg5[%c0_10, %c0_11, %c0_12] : memref<3x1x128xf32, #tpu.memory_space<vmem>>, vector<1x1x128xf32>
    %14 = vector.shape_cast %13 : vector<1x1x128xf32> to vector<1x128xf32>
    %15 = vector.broadcast %14 : vector<1x128xf32> to vector<8x128xf32>
    %16 = arith.addf %12, %15 : vector<8x128xf32>
    %cst_13 = arith.constant 0.000000e+00 : f32
    %17 = vector.broadcast %cst_13 : f32 to vector<8x128xf32>
    %18 = arith.maximumf %16, %17 : vector<8x128xf32>
    %19 = arith.truncf %18 : vector<8x128xf32> to vector<8x128xbf16>
    %c1 = arith.constant 1 : index
    %c0_14 = arith.constant 0 : index
    %c0_15 = arith.constant 0 : index
    %20 = vector.load %arg4[%c1, %c0_14, %c0_15] : memref<3x128x128xbf16, #tpu.memory_space<vmem>>, vector<1x128x128xbf16>
    %21 = vector.shape_cast %20 : vector<1x128x128xbf16> to vector<128x128xbf16>
    %cst_16 = arith.constant dense<0.000000e+00> : vector<8x128xf32>
    %22 = tpu.matmul %19, %21, %cst_16 {dimension_numbers = #tpu.dot_dimension_numbers<[1], [0], [0], [1], [0, 0, 1, 1], [], []>} : vector<8x128xbf16>, vector<128x128xbf16>, vector<8x128xf32> -> vector<8x128xf32>
    %c1_17 = arith.constant 1 : index
    %c0_18 = arith.constant 0 : index
    %c0_19 = arith.constant 0 : index
    %23 = vector.load %arg5[%c1_17, %c0_18, %c0_19] : memref<3x1x128xf32, #tpu.memory_space<vmem>>, vector<1x1x128xf32>
    %24 = vector.shape_cast %23 : vector<1x1x128xf32> to vector<1x128xf32>
    %25 = vector.broadcast %24 : vector<1x128xf32> to vector<8x128xf32>
    %26 = arith.addf %22, %25 : vector<8x128xf32>
    %cst_20 = arith.constant 0.000000e+00 : f32
    %27 = vector.broadcast %cst_20 : f32 to vector<8x128xf32>
    %28 = arith.maximumf %26, %27 : vector<8x128xf32>
    %29 = arith.truncf %28 : vector<8x128xf32> to vector<8x128xbf16>
    %c2 = arith.constant 2 : index
    %c0_21 = arith.constant 0 : index
    %c0_22 = arith.constant 0 : index
    %30 = vector.load %arg4[%c2, %c0_21, %c0_22] : memref<3x128x128xbf16, #tpu.memory_space<vmem>>, vector<1x128x128xbf16>
    %31 = vector.shape_cast %30 : vector<1x128x128xbf16> to vector<128x128xbf16>
    %cst_23 = arith.constant dense<0.000000e+00> : vector<8x128xf32>
    %32 = tpu.matmul %29, %31, %cst_23 {dimension_numbers = #tpu.dot_dimension_numbers<[1], [0], [0], [1], [0, 0, 1, 1], [], []>} : vector<8x128xbf16>, vector<128x128xbf16>, vector<8x128xf32> -> vector<8x128xf32>
    %c2_24 = arith.constant 2 : index
    %c0_25 = arith.constant 0 : index
    %c0_26 = arith.constant 0 : index
    %33 = vector.load %arg5[%c2_24, %c0_25, %c0_26] : memref<3x1x128xf32, #tpu.memory_space<vmem>>, vector<1x1x128xf32>
    %34 = vector.shape_cast %33 : vector<1x1x128xf32> to vector<1x128xf32>
    %35 = vector.broadcast %34 : vector<1x128xf32> to vector<8x128xf32>
    %36 = arith.addf %32, %35 : vector<8x128xf32>
    %cst_27 = arith.constant 0.000000e+00 : f32
    %37 = vector.broadcast %cst_27 : f32 to vector<8x128xf32>
    %38 = arith.maximumf %36, %37 : vector<8x128xf32>
    %39 = arith.truncf %38 : vector<8x128xf32> to vector<8x128xbf16>
    %c0_28 = arith.constant 0 : index
    %c0_29 = arith.constant 0 : index
    %40 = vector.load %arg6[%c0_28, %c0_29] : memref<128x128xbf16, #tpu.memory_space<vmem>>, vector<128x128xbf16>
    %cst_30 = arith.constant dense<0.000000e+00> : vector<8x128xf32>
    %41 = tpu.matmul %39, %40, %cst_30 {dimension_numbers = #tpu.dot_dimension_numbers<[1], [0], [0], [1], [0, 0, 1, 1], [], []>} : vector<8x128xbf16>, vector<128x128xbf16>, vector<8x128xf32> -> vector<8x128xf32>
    %c0_31 = arith.constant 0 : index
    %c0_32 = arith.constant 0 : index
    %42 = vector.load %arg7[%c0_31, %c0_32] : memref<1x128xf32, #tpu.memory_space<vmem>>, vector<1x128xf32>
    %43 = vector.broadcast %42 : vector<1x128xf32> to vector<8x128xf32>
    %44 = arith.addf %41, %43 : vector<8x128xf32>
    %cst_33 = arith.constant 0.000000e+00 : f32
    %45 = vector.broadcast %cst_33 : f32 to vector<8x128xf32>
    %46 = arith.maximumf %44, %45 : vector<8x128xf32>
    %c0_34 = arith.constant 0 : index
    %c0_35 = arith.constant 0 : index
    %47 = vector.load %arg14[%c0_34, %c0_35] : memref<8x128xf32, #tpu.memory_space<vmem>>, vector<8x128xf32>
    tpu.vector_store %arg14[%c0_34, %c0_35], %46 {strides = array<i32>} : memref<8x128xf32, #tpu.memory_space<vmem>>, vector<8x128xf32>,
    %c0_36 = arith.constant 0 : index
    %c0_37 = arith.constant 0 : index
    %48 = vector.load %arg8[%c0_36, %c0_37] : memref<32x128xbf16, #tpu.memory_space<vmem>>, vector<32x128xbf16>
    %cst_38 = arith.constant dense<0.000000e+00> : vector<8x128xf32>
    %49 = tpu.matmul %1, %48, %cst_38 {dimension_numbers = #tpu.dot_dimension_numbers<[1], [0], [0], [1], [0, 0, 1, 1], [], []>} : vector<8x32xbf16>, vector<32x128xbf16>, vector<8x128xf32> -> vector<8x128xf32>
    %c0_39 = arith.constant 0 : index
    %c0_40 = arith.constant 0 : index
    %50 = vector.load %arg9[%c0_39, %c0_40] : memref<1x128xf32, #tpu.memory_space<vmem>>, vector<1x128xf32>
    %51 = vector.broadcast %50 : vector<1x128xf32> to vector<8x128xf32>
    %52 = arith.addf %49, %51 : vector<8x128xf32>
    %cst_41 = arith.constant 0.000000e+00 : f32
    %53 = vector.broadcast %cst_41 : f32 to vector<8x128xf32>
    %54 = arith.maximumf %52, %53 : vector<8x128xf32>
    %55 = arith.truncf %54 : vector<8x128xf32> to vector<8x128xbf16>
    %c0_42 = arith.constant 0 : index
    %c0_43 = arith.constant 0 : index
    %c0_44 = arith.constant 0 : index
    %56 = vector.load %arg10[%c0_42, %c0_43, %c0_44] : memref<3x128x128xbf16, #tpu.memory_space<vmem>>, vector<1x128x128xbf16>
    %57 = vector.shape_cast %56 : vector<1x128x128xbf16> to vector<128x128xbf16>
    %cst_45 = arith.constant dense<0.000000e+00> : vector<8x128xf32>
    %58 = tpu.matmul %55, %57, %cst_45 {dimension_numbers = #tpu.dot_dimension_numbers<[1], [0], [0], [1], [0, 0, 1, 1], [], []>} : vector<8x128xbf16>, vector<128x128xbf16>, vector<8x128xf32> -> vector<8x128xf32>
    %c0_46 = arith.constant 0 : index
    %c0_47 = arith.constant 0 : index
    %c0_48 = arith.constant 0 : index
    %59 = vector.load %arg11[%c0_46, %c0_47, %c0_48] : memref<3x1x128xf32, #tpu.memory_space<vmem>>, vector<1x1x128xf32>
    %60 = vector.shape_cast %59 : vector<1x1x128xf32> to vector<1x128xf32>
    %61 = vector.broadcast %60 : vector<1x128xf32> to vector<8x128xf32>
    %62 = arith.addf %58, %61 : vector<8x128xf32>
    %cst_49 = arith.constant 0.000000e+00 : f32
    %63 = vector.broadcast %cst_49 : f32 to vector<8x128xf32>
    %64 = arith.maximumf %62, %63 : vector<8x128xf32>
    %65 = arith.truncf %64 : vector<8x128xf32> to vector<8x128xbf16>
    %c1_50 = arith.constant 1 : index
    %c0_51 = arith.constant 0 : index
    %c0_52 = arith.constant 0 : index
    %66 = vector.load %arg10[%c1_50, %c0_51, %c0_52] : memref<3x128x128xbf16, #tpu.memory_space<vmem>>, vector<1x128x128xbf16>
    %67 = vector.shape_cast %66 : vector<1x128x128xbf16> to vector<128x128xbf16>
    %cst_53 = arith.constant dense<0.000000e+00> : vector<8x128xf32>
    %68 = tpu.matmul %65, %67, %cst_53 {dimension_numbers = #tpu.dot_dimension_numbers<[1], [0], [0], [1], [0, 0, 1, 1], [], []>} : vector<8x128xbf16>, vector<128x128xbf16>, vector<8x128xf32> -> vector<8x128xf32>
    %c1_54 = arith.constant 1 : index
    %c0_55 = arith.constant 0 : index
    %c0_56 = arith.constant 0 : index
    %69 = vector.load %arg11[%c1_54, %c0_55, %c0_56] : memref<3x1x128xf32, #tpu.memory_space<vmem>>, vector<1x1x128xf32>
    %70 = vector.shape_cast %69 : vector<1x1x128xf32> to vector<1x128xf32>
    %71 = vector.broadcast %70 : vector<1x128xf32> to vector<8x128xf32>
    %72 = arith.addf %68, %71 : vector<8x128xf32>
    %cst_57 = arith.constant 0.000000e+00 : f32
    %73 = vector.broadcast %cst_57 : f32 to vector<8x128xf32>
    %74 = arith.maximumf %72, %73 : vector<8x128xf32>
    %75 = arith.truncf %74 : vector<8x128xf32> to vector<8x128xbf16>
    %c2_58 = arith.constant 2 : index
    %c0_59 = arith.constant 0 : index
    %c0_60 = arith.constant 0 : index
    %76 = vector.load %arg10[%c2_58, %c0_59, %c0_60] : memref<3x128x128xbf16, #tpu.memory_space<vmem>>, vector<1x128x128xbf16>
    %77 = vector.shape_cast %76 : vector<1x128x128xbf16> to vector<128x128xbf16>
    %cst_61 = arith.constant dense<0.000000e+00> : vector<8x128xf32>
    %78 = tpu.matmul %75, %77, %cst_61 {dimension_numbers = #tpu.dot_dimension_numbers<[1], [0], [0], [1], [0, 0, 1, 1], [], []>} : vector<8x128xbf16>, vector<128x128xbf16>, vector<8x128xf32> -> vector<8x128xf32>
    %c2_62 = arith.constant 2 : index
    %c0_63 = arith.constant 0 : index
    %c0_64 = arith.constant 0 : index
    %79 = vector.load %arg11[%c2_62, %c0_63, %c0_64] : memref<3x1x128xf32, #tpu.memory_space<vmem>>, vector<1x1x128xf32>
    %80 = vector.shape_cast %79 : vector<1x1x128xf32> to vector<1x128xf32>
    %81 = vector.broadcast %80 : vector<1x128xf32> to vector<8x128xf32>
    %82 = arith.addf %78, %81 : vector<8x128xf32>
    %cst_65 = arith.constant 0.000000e+00 : f32
    %83 = vector.broadcast %cst_65 : f32 to vector<8x128xf32>
    %84 = arith.maximumf %82, %83 : vector<8x128xf32>
    %85 = arith.truncf %84 : vector<8x128xf32> to vector<8x128xbf16>
    %c0_66 = arith.constant 0 : index
    %c0_67 = arith.constant 0 : index
    %86 = vector.load %arg12[%c0_66, %c0_67] : memref<128x128xbf16, #tpu.memory_space<vmem>>, vector<128x128xbf16>
    %cst_68 = arith.constant dense<0.000000e+00> : vector<8x128xf32>
    %87 = tpu.matmul %85, %86, %cst_68 {dimension_numbers = #tpu.dot_dimension_numbers<[1], [0], [0], [1], [0, 0, 1, 1], [], []>} : vector<8x128xbf16>, vector<128x128xbf16>, vector<8x128xf32> -> vector<8x128xf32>
    %c0_69 = arith.constant 0 : index
    %c0_70 = arith.constant 0 : index
    %88 = vector.load %arg13[%c0_69, %c0_70] : memref<1x128xf32, #tpu.memory_space<vmem>>, vector<1x128xf32>
    %89 = vector.broadcast %88 : vector<1x128xf32> to vector<8x128xf32>
    %90 = arith.addf %87, %89 : vector<8x128xf32>
    %cst_71 = arith.constant 0.000000e+00 : f32
    %91 = vector.broadcast %cst_71 : f32 to vector<8x128xf32>
    %92 = arith.maximumf %90, %91 : vector<8x128xf32>
    %c0_72 = arith.constant 0 : index
    %c0_73 = arith.constant 0 : index
    %93 = vector.load %arg15[%c0_72, %c0_73] : memref<8x128xf32, #tpu.memory_space<vmem>>, vector<8x128xf32>
    tpu.vector_store %arg15[%c0_72, %c0_73], %92 {strides = array<i32>} : memref<8x128xf32, #tpu.memory_space<vmem>>, vector<8x128xf32>,
    return
  }
  func.func @transform_0(%arg0: i32) -> (i32, i32) {
    %c0_i32 = arith.constant 0 : i32
    %c0_i32_0 = arith.constant 0 : i32
    return %arg0, %c0_i32 : i32, i32
  }
  func.func @transform_1(%arg0: i32) -> (i32, i32) {
    %c0_i32 = arith.constant 0 : i32
    %c0_i32_0 = arith.constant 0 : i32
    %c0_i32_1 = arith.constant 0 : i32
    return %c0_i32, %c0_i32_0 : i32, i32
  }
  func.func @transform_2(%arg0: i32) -> (i32, i32) {
    %c0_i32 = arith.constant 0 : i32
    %c0_i32_0 = arith.constant 0 : i32
    %c0_i32_1 = arith.constant 0 : i32
    return %c0_i32, %c0_i32_0 : i32, i32
  }
  func.func @transform_3(%arg0: i32) -> (i32, i32, i32) {
    %c0_i32 = arith.constant 0 : i32
    %c0_i32_0 = arith.constant 0 : i32
    %c0_i32_1 = arith.constant 0 : i32
    %c0_i32_2 = arith.constant 0 : i32
    return %c0_i32, %c0_i32_0, %c0_i32_1 : i32, i32, i32
  }
  func.func @transform_4(%arg0: i32) -> (i32, i32, i32) {
    %c0_i32 = arith.constant 0 : i32
    %c0_i32_0 = arith.constant 0 : i32
    %c0_i32_1 = arith.constant 0 : i32
    %c0_i32_2 = arith.constant 0 : i32
    return %c0_i32, %c0_i32_0, %c0_i32_1 : i32, i32, i32
  }
  func.func @transform_5(%arg0: i32) -> (i32, i32) {
    %c0_i32 = arith.constant 0 : i32
    %c0_i32_0 = arith.constant 0 : i32
    %c0_i32_1 = arith.constant 0 : i32
    return %c0_i32, %c0_i32_0 : i32, i32
  }
  func.func @transform_6(%arg0: i32) -> (i32, i32) {
    %c0_i32 = arith.constant 0 : i32
    %c0_i32_0 = arith.constant 0 : i32
    %c0_i32_1 = arith.constant 0 : i32
    return %c0_i32, %c0_i32_0 : i32, i32
  }
  func.func @transform_7(%arg0: i32) -> (i32, i32) {
    %c0_i32 = arith.constant 0 : i32
    %c0_i32_0 = arith.constant 0 : i32
    %c0_i32_1 = arith.constant 0 : i32
    return %c0_i32, %c0_i32_0 : i32, i32
  }
  func.func @transform_8(%arg0: i32) -> (i32, i32) {
    %c0_i32 = arith.constant 0 : i32
    %c0_i32_0 = arith.constant 0 : i32
    %c0_i32_1 = arith.constant 0 : i32
    return %c0_i32, %c0_i32_0 : i32, i32
  }
  func.func @transform_9(%arg0: i32) -> (i32, i32, i32) {
    %c0_i32 = arith.constant 0 : i32
    %c0_i32_0 = arith.constant 0 : i32
    %c0_i32_1 = arith.constant 0 : i32
    %c0_i32_2 = arith.constant 0 : i32
    return %c0_i32, %c0_i32_0, %c0_i32_1 : i32, i32, i32
  }
  func.func @transform_10(%arg0: i32) -> (i32, i32, i32) {
    %c0_i32 = arith.constant 0 : i32
    %c0_i32_0 = arith.constant 0 : i32
    %c0_i32_1 = arith.constant 0 : i32
    %c0_i32_2 = arith.constant 0 : i32
    return %c0_i32, %c0_i32_0, %c0_i32_1 : i32, i32, i32
  }
  func.func @transform_11(%arg0: i32) -> (i32, i32) {
    %c0_i32 = arith.constant 0 : i32
    %c0_i32_0 = arith.constant 0 : i32
    %c0_i32_1 = arith.constant 0 : i32
    return %c0_i32, %c0_i32_0 : i32, i32
  }
  func.func @transform_12(%arg0: i32) -> (i32, i32) {
    %c0_i32 = arith.constant 0 : i32
    %c0_i32_0 = arith.constant 0 : i32
    %c0_i32_1 = arith.constant 0 : i32
    return %c0_i32, %c0_i32_0 : i32, i32
  }
  func.func @transform_13(%arg0: i32) -> (i32, i32) {
    %c0_i32 = arith.constant 0 : i32
    %c0_i32_0 = arith.constant 0 : i32
    return %arg0, %c0_i32 : i32, i32
  }
  func.func @transform_14(%arg0: i32) -> (i32, i32) {
    %c0_i32 = arith.constant 0 : i32
    %c0_i32_0 = arith.constant 0 : i32
    return %arg0, %c0_i32 : i32, i32
  }
}

</mosaic_0001>

<llo_original>
// kernel: tpu_custom_call.1
$region0: #{tpu_custom_call.1}
  #allocation0 [shape = 'u32[]', space=smem, size = 0x4, offset = 0x4, fixed_abs, tag = 'smem constant byte address 0x4 - core index']
  #allocation1 [shape = 'u32[72,128]{1,0:T(1,128)}', space=vmem, size = 0x9000, scoped, tag = 'internal scratch']
  %s0 = inlined_call_operand.hbm [shape: f32[8,32], index: 0, kind: input, shape index: {}]
  %s1 = inlined_call_operand.hbm [shape: bf16[32,128], index: 1, kind: input, shape index: {}]
  %s2 = inlined_call_operand.hbm [shape: f32[1,128], index: 2, kind: input, shape index: {}]
  %s3 = inlined_call_operand.hbm [shape: bf16[3,128,128], index: 3, kind: input, shape index: {}]
  %s4 = inlined_call_operand.vmem [shape: f32[3,1,128], index: 4, kind: input, shape index: {}]
  %s5 = inlined_call_operand.hbm [shape: bf16[128,128], index: 5, kind: input, shape index: {}]
  %s6 = inlined_call_operand.hbm [shape: f32[1,128], index: 6, kind: input, shape index: {}]
  %s7 = inlined_call_operand.hbm [shape: bf16[32,128], index: 7, kind: input, shape index: {}]
  %s8 = inlined_call_operand.vmem [shape: f32[1,128], index: 8, kind: input, shape index: {}]
  %s9 = inlined_call_operand.hbm [shape: bf16[3,128,128], index: 9, kind: input, shape index: {}]
  %s10 = inlined_call_operand.vmem [shape: f32[3,1,128], index: 10, kind: input, shape index: {}]
  %s11 = inlined_call_operand.hbm [shape: bf16[128,128], index: 11, kind: input, shape index: {}]
  %s12 = inlined_call_operand.vmem [shape: f32[1,128], index: 12, kind: input, shape index: {}]
  %s13 = inlined_call_operand.hbm [shape: f32[8,128], index: 13, kind: output, shape index: {0}]
  %s14 = inlined_call_operand.hbm [shape: f32[8,128], index: 14, kind: output, shape index: {1}]
  %15 = xla_tuple %s13, %s14
  %s16 = sld [smem:[#allocation0]]
  $region106: #{tpu_custom_call.1} parent=0
    _
  %s18 = ssub.s32 1, %s16
  %s19 = scalar_select 0, %s18, %s16
  $region1: #{tpu_custom_call.1} parent=0
    #allocation2 [shape = 'u8[4096]{0}', space=vmem, size = 0x1000, scoped, tag = 'input window, operand 0, single buffered']
    #allocation3 [shape = 's32[1]{0}', space=sflag, size = 0x4, scoped, tag = 'scoped memory for tpu_custom_call.1']
    #allocation4 [shape = 's32[1]{0}', space=sflag, size = 0x4, scoped, tag = 'scoped memory for tpu_custom_call.1']
    #allocation5 [shape = 'u8[8192]{0}', space=vmem, size = 0x2000, scoped, tag = 'input window, operand 1, single buffered']
    #allocation6 [shape = 's32[1]{0}', space=sflag, size = 0x4, scoped, tag = 'scoped memory for tpu_custom_call.1']
    #allocation7 [shape = 'u8[512]{0}', space=vmem, size = 0x400, scoped, tag = 'input window, operand 2, single buffered']
    #allocation8 [shape = 'u8[98304]{0}', space=vmem, size = 0x18000, scoped, tag = 'input window, operand 3, single buffered']
    #allocation9 [shape = 's32[1]{0}', space=sflag, size = 0x4, scoped, tag = 'scoped memory for tpu_custom_call.1']
    #allocation10 [shape = 'u8[32768]{0}', space=vmem, size = 0x8000, scoped, tag = 'input window, operand 5, single buffered']
    #allocation11 [shape = 'u8[512]{0}', space=vmem, size = 0x400, scoped, tag = 'input window, operand 6, single buffered']
    #allocation12 [shape = 's32[1]{0}', space=sflag, size = 0x4, scoped, tag = 'scoped memory for tpu_custom_call.1']
    #allocation13 [shape = 'u8[8192]{0}', space=vmem, size = 0x2000, scoped, tag = 'input window, operand 7, single buffered']
    #allocation14 [shape = 'u8[98304]{0}', space=vmem, size = 0x18000, scoped, tag = 'input window, operand 9, single buffered']
    #allocation15 [shape = 's32[1]{0}', space=sflag, size = 0x4, scoped, tag = 'scoped memory for tpu_custom_call.1']
    #allocation16 [shape = 'u8[32768]{0}', space=vmem, size = 0x8000, scoped, tag = 'input window, operand 11, single buffered']
    #allocation17 [shape = 'u8[4096]{0}', space=vmem, size = 0x1000, scoped, tag = 'output window, operand 0, single buffered']
    #allocation18 [shape = 'u8[4096]{0}', space=vmem, size = 0x1000, scoped, tag = 'output window, operand 1, single buffered']
    #allocation19 [shape = 's32[1]{0}', space=sflag, size = 0x4, scoped, tag = 'scoped memory for tpu_custom_call.1']
    %20 = vsyncpa [#allocation3], 0
    %21 = vsyncpa [#allocation6], 0
    %22 = vsyncpa [#allocation9], 0
    %23 = vsyncpa [#allocation12], 0
    %24 = vsyncpa [#allocation15], 0
    %25 = vsyncpa [#allocation4], 0
    %26 = vsyncpa [#allocation19], 0
    // Predicated region
    $region2: #{tpu_custom_call.1} parent=1 // pred_check
      _
    $region3: #{tpu_custom_call.1} parent=1 // pred_check_branch
      %28 = sbr.rel (0) target = $region5
    $region4: #{tpu_custom_call.1} parent=1 // pred_region
      %30 = vsyncadd [#allocation3], 0
      %s32 = sshll.u32 %s0, 4
      %s33 = int_to_ptr.hbm [resolvable:$true] %s32
      %s34 = sshll.u32 [#allocation2], 4
      %s35 = int_to_ptr.vmem [resolvable:$true] %s34
      %37 = dma.hbm_to_vmem [thread:$0]  %s33, 128, %s35, [#allocation3]
    $region5: #{tpu_custom_call.1} parent=1 // pred_fallthru
      _
    // Predicated region
    $region6: #{tpu_custom_call.1} parent=1 // pred_check
      _
    $region7: #{tpu_custom_call.1} parent=1 // pred_check_branch
      %39 = sbr.rel (0) target = $region9
    $region8: #{tpu_custom_call.1} parent=1 // pred_region
      %41 = vsyncadd [#allocation6], 0
      %s42 = sshll.u32 %s1, 4
      %s43 = int_to_ptr.hbm [resolvable:$true] %s42
      %s44 = sshll.u32 [#allocation5], 4
      %s45 = int_to_ptr.vmem [resolvable:$true] %s44
      %50 = dma.hbm_to_vmem [thread:$0]  %s43, 256, %s45, [#allocation6], 64, 64, 4
    $region9: #{tpu_custom_call.1} parent=1 // pred_fallthru
      _
    // Predicated region
    $region10: #{tpu_custom_call.1} parent=1 // pred_check
      _
    $region11: #{tpu_custom_call.1} parent=1 // pred_check_branch
      %52 = sbr.rel (0) target = $region13
    $region12: #{tpu_custom_call.1} parent=1 // pred_region
      %54 = vsyncadd [#allocation6], 0
      %s56 = sshll.u32 %s2, 4
      %s57 = int_to_ptr.hbm [resolvable:$true] %s56
      %s58 = sshll.u32 [#allocation7], 4
      %s59 = int_to_ptr.vmem [resolvable:$true] %s58
      %61 = dma.hbm_to_vmem [thread:$0]  %s57, 16, %s59, [#allocation6]
    $region13: #{tpu_custom_call.1} parent=1 // pred_fallthru
      _
    // Predicated region
    $region14: #{tpu_custom_call.1} parent=1 // pred_check
      _
    $region15: #{tpu_custom_call.1} parent=1 // pred_check_branch
      %63 = sbr.rel (0) target = $region17
    $region16: #{tpu_custom_call.1} parent=1 // pred_region
      %65 = vsyncadd [#allocation9], 0
      %s66 = sshll.u32 %s3, 4
      %s67 = int_to_ptr.hbm [resolvable:$true] %s66
      %s68 = sshll.u32 [#allocation8], 4
      %s69 = int_to_ptr.vmem [resolvable:$true] %s68
      %74 = dma.hbm_to_vmem [thread:$0]  %s67, 3072, %s69, [#allocation9], 64, 64, 4
    $region17: #{tpu_custom_call.1} parent=1 // pred_fallthru
      _
    // Predicated region
    $region18: #{tpu_custom_call.1} parent=1 // pred_check
      _
    $region19: #{tpu_custom_call.1} parent=1 // pred_check_branch
      %76 = sbr.rel (0) target = $region21
    $region20: #{tpu_custom_call.1} parent=1 // pred_region
      _
    $region21: #{tpu_custom_call.1} parent=1 // pred_fallthru
      _
    // Predicated region
    $region22: #{tpu_custom_call.1} parent=1 // pred_check
      _
    $region23: #{tpu_custom_call.1} parent=1 // pred_check_branch
      %78 = sbr.rel (0) target = $region25
    $region24: #{tpu_custom_call.1} parent=1 // pred_region
      %80 = vsyncadd [#allocation9], 0
      %s81 = sshll.u32 %s5, 4
      %s82 = int_to_ptr.hbm [resolvable:$true] %s81
      %s83 = sshll.u32 [#allocation10], 4
      %s84 = int_to_ptr.vmem [resolvable:$true] %s83
      %89 = dma.hbm_to_vmem [thread:$0]  %s82, 1024, %s84, [#allocation9], 64, 64, 4
    $region25: #{tpu_custom_call.1} parent=1 // pred_fallthru
      _
    // Predicated region
    $region26: #{tpu_custom_call.1} parent=1 // pred_check
      _
    $region27: #{tpu_custom_call.1} parent=1 // pred_check_branch
      %91 = sbr.rel (0) target = $region29
    $region28: #{tpu_custom_call.1} parent=1 // pred_region
      %93 = vsyncadd [#allocation12], 0
      %s95 = sshll.u32 %s6, 4
      %s96 = int_to_ptr.hbm [resolvable:$true] %s95
      %s97 = sshll.u32 [#allocation11], 4
      %s98 = int_to_ptr.vmem [resolvable:$true] %s97
      %100 = dma.hbm_to_vmem [thread:$0]  %s96, 16, %s98, [#allocation12]
    $region29: #{tpu_custom_call.1} parent=1 // pred_fallthru
      _
    // Predicated region
    $region30: #{tpu_custom_call.1} parent=1 // pred_check
      _
    $region31: #{tpu_custom_call.1} parent=1 // pred_check_branch
      %102 = sbr.rel (0) target = $region33
    $region32: #{tpu_custom_call.1} parent=1 // pred_region
      %104 = vsyncadd [#allocation12], 0
      %s105 = sshll.u32 %s7, 4
      %s106 = int_to_ptr.hbm [resolvable:$true] %s105
      %s107 = sshll.u32 [#allocation13], 4
      %s108 = int_to_ptr.vmem [resolvable:$true] %s107
      %113 = dma.hbm_to_vmem [thread:$0]  %s106, 256, %s108, [#allocation12], 64, 64, 4
    $region33: #{tpu_custom_call.1} parent=1 // pred_fallthru
      _
    // Predicated region
    $region34: #{tpu_custom_call.1} parent=1 // pred_check
      _
    $region35: #{tpu_custom_call.1} parent=1 // pred_check_branch
      %115 = sbr.rel (0) target = $region37
    $region36: #{tpu_custom_call.1} parent=1 // pred_region
      _
    $region37: #{tpu_custom_call.1} parent=1 // pred_fallthru
      _
    // Predicated region
    $region38: #{tpu_custom_call.1} parent=1 // pred_check
      _
    $region39: #{tpu_custom_call.1} parent=1 // pred_check_branch
      %117 = sbr.rel (0) target = $region41
    $region40: #{tpu_custom_call.1} parent=1 // pred_region
      %119 = vsyncadd [#allocation15], 0
      %s120 = sshll.u32 %s9, 4
      %s121 = int_to_ptr.hbm [resolvable:$true] %s120
      %s122 = sshll.u32 [#allocation14], 4
      %s123 = int_to_ptr.vmem [resolvable:$true] %s122
      %128 = dma.hbm_to_vmem [thread:$0]  %s121, 3072, %s123, [#allocation15], 64, 64, 4
    $region41: #{tpu_custom_call.1} parent=1 // pred_fallthru
      _
    // Predicated region
    $region42: #{tpu_custom_call.1} parent=1 // pred_check
      _
    $region43: #{tpu_custom_call.1} parent=1 // pred_check_branch
      %130 = sbr.rel (0) target = $region45
    $region44: #{tpu_custom_call.1} parent=1 // pred_region
      _
    $region45: #{tpu_custom_call.1} parent=1 // pred_fallthru
      _
    // Predicated region
    $region46: #{tpu_custom_call.1} parent=1 // pred_check
      _
    $region47: #{tpu_custom_call.1} parent=1 // pred_check_branch
      %132 = sbr.rel (0) target = $region49
    $region48: #{tpu_custom_call.1} parent=1 // pred_region
      %134 = vsyncadd [#allocation15], 0
      %s135 = sshll.u32 %s11, 4
      %s136 = int_to_ptr.hbm [resolvable:$true] %s135
      %s137 = sshll.u32 [#allocation16], 4
      %s138 = int_to_ptr.vmem [resolvable:$true] %s137
      %143 = dma.hbm_to_vmem [thread:$0]  %s136, 1024, %s138, [#allocation15], 64, 64, 4
    $region49: #{tpu_custom_call.1} parent=1 // pred_fallthru
      _
    // Predicated region
    $region50: #{tpu_custom_call.1} parent=1 // pred_check
      _
    $region51: #{tpu_custom_call.1} parent=1 // pred_check_branch
      %145 = sbr.rel (0) target = $region53
    $region52: #{tpu_custom_call.1} parent=1 // pred_region
      _
    $region53: #{tpu_custom_call.1} parent=1 // pred_fallthru
      _
    // Predicated region
    $region54: #{tpu_custom_call.1} parent=1 // pred_check
      _
    $region55: #{tpu_custom_call.1} parent=1 // pred_check_branch
      %147 = sbr.rel (0) target = $region57
    $region56: #{tpu_custom_call.1} parent=1 // pred_region
      %149 = dma.done [#allocation3], 128
    $region57: #{tpu_custom_call.1} parent=1 // pred_fallthru
      _
    // Predicated region
    $region58: #{tpu_custom_call.1} parent=1 // pred_check
      _
    $region59: #{tpu_custom_call.1} parent=1 // pred_check_branch
      %151 = sbr.rel (0) target = $region61
    $region60: #{tpu_custom_call.1} parent=1 // pred_region
      %153 = dma.done [#allocation6], 256
    $region61: #{tpu_custom_call.1} parent=1 // pred_fallthru
      _
    // Predicated region
    $region62: #{tpu_custom_call.1} parent=1 // pred_check
      _
    $region63: #{tpu_custom_call.1} parent=1 // pred_check_branch
      %155 = sbr.rel (0) target = $region65
    $region64: #{tpu_custom_call.1} parent=1 // pred_region
      %157 = dma.done [#allocation6], 16
    $region65: #{tpu_custom_call.1} parent=1 // pred_fallthru
      _
    // Predicated region
    $region66: #{tpu_custom_call.1} parent=1 // pred_check
      _
    $region67: #{tpu_custom_call.1} parent=1 // pred_check_branch
      %159 = sbr.rel (0) target = $region69
    $region68: #{tpu_custom_call.1} parent=1 // pred_region
      %161 = dma.done [#allocation9], 3072
    $region69: #{tpu_custom_call.1} parent=1 // pred_fallthru
      _
    // Predicated region
    $region70: #{tpu_custom_call.1} parent=1 // pred_check
      _
    $region71: #{tpu_custom_call.1} parent=1 // pred_check_branch
      %163 = sbr.rel (0) target = $region73
    $region72: #{tpu_custom_call.1} parent=1 // pred_region
      %165 = dma.done [#allocation9], 1024
    $region73: #{tpu_custom_call.1} parent=1 // pred_fallthru
      _
    // Predicated region
    $region74: #{tpu_custom_call.1} parent=1 // pred_check
      _
    $region75: #{tpu_custom_call.1} parent=1 // pred_check_branch
      %167 = sbr.rel (0) target = $region77
    $region76: #{tpu_custom_call.1} parent=1 // pred_region
      %169 = dma.done [#allocation12], 16
    $region77: #{tpu_custom_call.1} parent=1 // pred_fallthru
      _
    // Predicated region
    $region78: #{tpu_custom_call.1} parent=1 // pred_check
      _
    $region79: #{tpu_custom_call.1} parent=1 // pred_check_branch
      %171 = sbr.rel (0) target = $region81
    $region80: #{tpu_custom_call.1} parent=1 // pred_region
      %173 = dma.done [#allocation12], 256
    $region81: #{tpu_custom_call.1} parent=1 // pred_fallthru
      _
    // Predicated region
    $region82: #{tpu_custom_call.1} parent=1 // pred_check
      _
    $region83: #{tpu_custom_call.1} parent=1 // pred_check_branch
      %175 = sbr.rel (0) target = $region85
    $region84: #{tpu_custom_call.1} parent=1 // pred_region
      %177 = dma.done [#allocation15], 3072
    $region85: #{tpu_custom_call.1} parent=1 // pred_fallthru
      _
    // Predicated region
    $region86: #{tpu_custom_call.1} parent=1 // pred_check
      _
    $region87: #{tpu_custom_call.1} parent=1 // pred_check_branch
      %179 = sbr.rel (0) target = $region89
    $region88: #{tpu_custom_call.1} parent=1 // pred_region
      %181 = dma.done [#allocation15], 1024
    $region89: #{tpu_custom_call.1} parent=1 // pred_fallthru
      _
    %v183 = vld [vmem:[#allocation2] sm:$0xff]
    %v184 = vpack.c.bf16 %v183, %v183
    %v185 = vld [vmem:[#allocation5] sm:$0xf]
    %v186 = vld [vmem:[#allocation5 + $0x4] sm:$0xf]
    %v187 = vld [vmem:[#allocation5 + $0x8] sm:$0xf]
    %v188 = vld [vmem:[#allocation5 + $0xc] sm:$0xf]
    %v189 = vld [vmem:[#allocation7] sm:$0x1]
    %v191 = vperm.slane %v189, 0
    %v197 = vunpack.c.l.b16 %v185
    %v198 = vunpack.c.l.b16 %v186
    %v199 = vunpack.c.l.b16 %v187
    %v200 = vunpack.c.l.b16 %v188
    %v201 = vpack.c.b16 %v198, %v197
    %v202 = vpack.c.b16 %v200, %v199
    %vm205 = vcmask 261120
    %v207 = vsel %vm205, %v184, 0
    %209 = vmatpush.bf16.msra.mxu0 0
    %210 = vmatpush.bf16.msra.mxu0 0
    %211 = vmatpush.bf16.msra.mxu0 0
    %212 = vmatpush.bf16.msra.mxu0 0
    %213 = vmatpush.bf16.msra.mxu0 0
    %214 = vmatpush.bf16.msra.mxu0 0
    %215 = vmatpush.bf16.msra.mxu0 %v202
    %216 = vmatpush.bf16.msra.mxu0 %v201
    %217 = vmatmul.bf16.gmra.mxu0 %v207
    %v218 = vpop.f32.mrf.mxu0
    %v219 = vadd.f32 %v191, %v218
    %v220 = vpop.f32.mrf.mxu0
    %221 = vdwg.mxu0
    %v222 = vmax.f32 %v219, 0.0
    %v223 = vpack.c.bf16 %v222, %v222
    %v224 = vld [vmem:[#allocation8] sm:$0xf]
    %v225 = vld [vmem:[#allocation8 + $0x4] sm:$0xf]
    %v226 = vld [vmem:[#allocation8 + $0x8] sm:$0xf]
    %v227 = vld [vmem:[#allocation8 + $0xc] sm:$0xf]
    %v228 = vld [vmem:[#allocation8 + $0x10] sm:$0xf]
    %v229 = vld [vmem:[#allocation8 + $0x14] sm:$0xf]
    %v230 = vld [vmem:[#allocation8 + $0x18] sm:$0xf]
    %v231 = vld [vmem:[#allocation8 + $0x1c] sm:$0xf]
    %v232 = vld [vmem:[#allocation8 + $0x20] sm:$0xf]
    %v233 = vld [vmem:[#allocation8 + $0x24] sm:$0xf]
    %v234 = vld [vmem:[#allocation8 + $0x28] sm:$0xf]
    %v235 = vld [vmem:[#allocation8 + $0x2c] sm:$0xf]
    %v236 = vld [vmem:[#allocation8 + $0x30] sm:$0xf]
    %v237 = vld [vmem:[#allocation8 + $0x34] sm:$0xf]
    %v238 = vld [vmem:[#allocation8 + $0x38] sm:$0xf]
    %v239 = vld [vmem:[#allocation8 + $0x3c] sm:$0xf]
    %v240 = vld [vmem:[%s4] sm:$0x1]
    %v242 = vperm.slane %v240, 0
    %v260 = vunpack.c.l.b16 %v224
    %v261 = vunpack.c.l.b16 %v225
    %v262 = vunpack.c.l.b16 %v226
    %v263 = vunpack.c.l.b16 %v227
    %v264 = vunpack.c.l.b16 %v228
    %v265 = vunpack.c.l.b16 %v229
    %v266 = vunpack.c.l.b16 %v230
    %v267 = vunpack.c.l.b16 %v231
    %v268 = vunpack.c.l.b16 %v232
    %v269 = vunpack.c.l.b16 %v233
    %v270 = vunpack.c.l.b16 %v234
    %v271 = vunpack.c.l.b16 %v235
    %v272 = vunpack.c.l.b16 %v236
    %v273 = vunpack.c.l.b16 %v237
    %v274 = vunpack.c.l.b16 %v238
    %v275 = vunpack.c.l.b16 %v239
    %v276 = vpack.c.b16 %v261, %v260
    %v277 = vpack.c.b16 %v263, %v262
    %v278 = vpack.c.b16 %v265, %v264
    %v279 = vpack.c.b16 %v267, %v266
    %v280 = vpack.c.b16 %v269, %v268
    %v281 = vpack.c.b16 %v271, %v270
    %v282 = vpack.c.b16 %v273, %v272
    %v283 = vpack.c.b16 %v275, %v274
    %292 = vmatpush.bf16.msra.mxu0 %v283
    %293 = vmatpush.bf16.msra.mxu0 %v282
    %294 = vmatpush.bf16.msra.mxu0 %v281
    %295 = vmatpush.bf16.msra.mxu0 %v280
    %296 = vmatpush.bf16.msra.mxu0 %v279
    %297 = vmatpush.bf16.msra.mxu0 %v278
    %298 = vmatpush.bf16.msra.mxu0 %v277
    %299 = vmatpush.bf16.msra.mxu0 %v276
    %300 = vmatmul.bf16.gmra.mxu0 %v223
    %v301 = vpop.f32.mrf.mxu0
    %v302 = vadd.f32 %v242, %v301
    %v303 = vpop.f32.mrf.mxu0
    %304 = vdwg.mxu0
    %v305 = vmax.f32 %v302, 0.0
    %v306 = vpack.c.bf16 %v305, %v305
    %s307 = scalar_lea.vmem [#allocation8], 64
    %v308 = vld [vmem:[%s307] sm:$0xf]
    %v309 = vld [vmem:[%s307 + $0x4] sm:$0xf]
    %v310 = vld [vmem:[%s307 + $0x8] sm:$0xf]
    %v311 = vld [vmem:[%s307 + $0xc] sm:$0xf]
    %v312 = vld [vmem:[%s307 + $0x10] sm:$0xf]
    %v313 = vld [vmem:[%s307 + $0x14] sm:$0xf]
    %v314 = vld [vmem:[%s307 + $0x18] sm:$0xf]
    %v315 = vld [vmem:[%s307 + $0x1c] sm:$0xf]
    %v316 = vld [vmem:[%s307 + $0x20] sm:$0xf]
    %v317 = vld [vmem:[%s307 + $0x24] sm:$0xf]
    %v318 = vld [vmem:[%s307 + $0x28] sm:$0xf]
    %v319 = vld [vmem:[%s307 + $0x2c] sm:$0xf]
    %v320 = vld [vmem:[%s307 + $0x30] sm:$0xf]
    %v321 = vld [vmem:[%s307 + $0x34] sm:$0xf]
    %v322 = vld [vmem:[%s307 + $0x38] sm:$0xf]
    %v323 = vld [vmem:[%s307 + $0x3c] sm:$0xf]
    %s324 = scalar_lea.vmem %s4, 1
    %v325 = vld [vmem:[%s324] sm:$0x1]
    %v327 = vperm.slane %v325, 0
    %v345 = vunpack.c.l.b16 %v308
    %v346 = vunpack.c.l.b16 %v309
    %v347 = vunpack.c.l.b16 %v310
    %v348 = vunpack.c.l.b16 %v311
    %v349 = vunpack.c.l.b16 %v312
    %v350 = vunpack.c.l.b16 %v313
    %v351 = vunpack.c.l.b16 %v314
    %v352 = vunpack.c.l.b16 %v315
    %v353 = vunpack.c.l.b16 %v316
    %v354 = vunpack.c.l.b16 %v317
    %v355 = vunpack.c.l.b16 %v318
    %v356 = vunpack.c.l.b16 %v319
    %v357 = vunpack.c.l.b16 %v320
    %v358 = vunpack.c.l.b16 %v321
    %v359 = vunpack.c.l.b16 %v322
    %v360 = vunpack.c.l.b16 %v323
    %v361 = vpack.c.b16 %v346, %v345
    %v362 = vpack.c.b16 %v348, %v347
    %v363 = vpack.c.b16 %v350, %v349
    %v364 = vpack.c.b16 %v352, %v351
    %v365 = vpack.c.b16 %v354, %v353
    %v366 = vpack.c.b16 %v356, %v355
    %v367 = vpack.c.b16 %v358, %v357
    %v368 = vpack.c.b16 %v360, %v359
    %377 = vmatpush.bf16.msra.mxu0 %v368
    %378 = vmatpush.bf16.msra.mxu0 %v367
    %379 = vmatpush.bf16.msra.mxu0 %v366
    %380 = vmatpush.bf16.msra.mxu0 %v365
    %381 = vmatpush.bf16.msra.mxu0 %v364
    %382 = vmatpush.bf16.msra.mxu0 %v363
    %383 = vmatpush.bf16.msra.mxu0 %v362
    %384 = vmatpush.bf16.msra.mxu0 %v361
    %385 = vmatmul.bf16.gmra.mxu0 %v306
    %v386 = vpop.f32.mrf.mxu0
    %v387 = vadd.f32 %v327, %v386
    %v388 = vpop.f32.mrf.mxu0
    %389 = vdwg.mxu0
    %v390 = vmax.f32 %v387, 0.0
    %v391 = vpack.c.bf16 %v390, %v390
    %s392 = scalar_lea.vmem [#allocation8], 128
    %v393 = vld [vmem:[%s392] sm:$0xf]
    %v394 = vld [vmem:[%s392 + $0x4] sm:$0xf]
    %v395 = vld [vmem:[%s392 + $0x8] sm:$0xf]
    %v396 = vld [vmem:[%s392 + $0xc] sm:$0xf]
    %v397 = vld [vmem:[%s392 + $0x10] sm:$0xf]
    %v398 = vld [vmem:[%s392 + $0x14] sm:$0xf]
    %v399 = vld [vmem:[%s392 + $0x18] sm:$0xf]
    %v400 = vld [vmem:[%s392 + $0x1c] sm:$0xf]
    %v401 = vld [vmem:[%s392 + $0x20] sm:$0xf]
    %v402 = vld [vmem:[%s392 + $0x24] sm:$0xf]
    %v403 = vld [vmem:[%s392 + $0x28] sm:$0xf]
    %v404 = vld [vmem:[%s392 + $0x2c] sm:$0xf]
    %v405 = vld [vmem:[%s392 + $0x30] sm:$0xf]
    %v406 = vld [vmem:[%s392 + $0x34] sm:$0xf]
    %v407 = vld [vmem:[%s392 + $0x38] sm:$0xf]
    %v408 = vld [vmem:[%s392 + $0x3c] sm:$0xf]
    %s409 = scalar_lea.vmem %s4, 2
    %v410 = vld [vmem:[%s409] sm:$0x1]
    %v412 = vperm.slane %v410, 0
    %v430 = vunpack.c.l.b16 %v393
    %v431 = vunpack.c.l.b16 %v394
    %v432 = vunpack.c.l.b16 %v395
    %v433 = vunpack.c.l.b16 %v396
    %v434 = vunpack.c.l.b16 %v397
    %v435 = vunpack.c.l.b16 %v398
    %v436 = vunpack.c.l.b16 %v399
    %v437 = vunpack.c.l.b16 %v400
    %v438 = vunpack.c.l.b16 %v401
    %v439 = vunpack.c.l.b16 %v402
    %v440 = vunpack.c.l.b16 %v403
    %v441 = vunpack.c.l.b16 %v404
    %v442 = vunpack.c.l.b16 %v405
    %v443 = vunpack.c.l.b16 %v406
    %v444 = vunpack.c.l.b16 %v407
    %v445 = vunpack.c.l.b16 %v408
    %v446 = vpack.c.b16 %v431, %v430
    %v447 = vpack.c.b16 %v433, %v432
    %v448 = vpack.c.b16 %v435, %v434
    %v449 = vpack.c.b16 %v437, %v436
    %v450 = vpack.c.b16 %v439, %v438
    %v451 = vpack.c.b16 %v441, %v440
    %v452 = vpack.c.b16 %v443, %v442
    %v453 = vpack.c.b16 %v445, %v444
    %462 = vmatpush.bf16.msra.mxu0 %v453
    %463 = vmatpush.bf16.msra.mxu0 %v452
    %464 = vmatpush.bf16.msra.mxu0 %v451
    %465 = vmatpush.bf16.msra.mxu0 %v450
    %466 = vmatpush.bf16.msra.mxu0 %v449
    %467 = vmatpush.bf16.msra.mxu0 %v448
    %468 = vmatpush.bf16.msra.mxu0 %v447
    %469 = vmatpush.bf16.msra.mxu0 %v446
    %470 = vmatmul.bf16.gmra.mxu0 %v391
    %v471 = vpop.f32.mrf.mxu0
    %v472 = vadd.f32 %v412, %v471
    %v473 = vpop.f32.mrf.mxu0
    %474 = vdwg.mxu0
    %v475 = vmax.f32 %v472, 0.0
    %v476 = vpack.c.bf16 %v475, %v475
    %v477 = vld [vmem:[#allocation10] sm:$0xf]
    %v478 = vld [vmem:[#allocation10 + $0x4] sm:$0xf]
    %v479 = vld [vmem:[#allocation10 + $0x8] sm:$0xf]
    %v480 = vld [vmem:[#allocation10 + $0xc] sm:$0xf]
    %v481 = vld [vmem:[#allocation10 + $0x10] sm:$0xf]
    %v482 = vld [vmem:[#allocation10 + $0x14] sm:$0xf]
    %v483 = vld [vmem:[#allocation10 + $0x18] sm:$0xf]
    %v484 = vld [vmem:[#allocation10 + $0x1c] sm:$0xf]
    %v485 = vld [vmem:[#allocation10 + $0x20] sm:$0xf]
    %v486 = vld [vmem:[#allocation10 + $0x24] sm:$0xf]
    %v487 = vld [vmem:[#allocation10 + $0x28] sm:$0xf]
    %v488 = vld [vmem:[#allocation10 + $0x2c] sm:$0xf]
    %v489 = vld [vmem:[#allocation10 + $0x30] sm:$0xf]
    %v490 = vld [vmem:[#allocation10 + $0x34] sm:$0xf]
    %v491 = vld [vmem:[#allocation10 + $0x38] sm:$0xf]
    %v492 = vld [vmem:[#allocation10 + $0x3c] sm:$0xf]
    %v493 = vld [vmem:[#allocation11] sm:$0x1]
    %v495 = vperm.slane %v493, 0
    %v513 = vunpack.c.l.b16 %v477
    %v514 = vunpack.c.l.b16 %v478
    %v515 = vunpack.c.l.b16 %v479
    %v516 = vunpack.c.l.b16 %v480
    %v517 = vunpack.c.l.b16 %v481
    %v518 = vunpack.c.l.b16 %v482
    %v519 = vunpack.c.l.b16 %v483
    %v520 = vunpack.c.l.b16 %v484
    %v521 = vunpack.c.l.b16 %v485
    %v522 = vunpack.c.l.b16 %v486
    %v523 = vunpack.c.l.b16 %v487
    %v524 = vunpack.c.l.b16 %v488
    %v525 = vunpack.c.l.b16 %v489
    %v526 = vunpack.c.l.b16 %v490
    %v527 = vunpack.c.l.b16 %v491
    %v528 = vunpack.c.l.b16 %v492
    %v529 = vpack.c.b16 %v514, %v513
    %v530 = vpack.c.b16 %v516, %v515
    %v531 = vpack.c.b16 %v518, %v517
    %v532 = vpack.c.b16 %v520, %v519
    %v533 = vpack.c.b16 %v522, %v521
    %v534 = vpack.c.b16 %v524, %v523
    %v535 = vpack.c.b16 %v526, %v525
    %v536 = vpack.c.b16 %v528, %v527
    %545 = vmatpush.bf16.msra.mxu0 %v536
    %546 = vmatpush.bf16.msra.mxu0 %v535
    %547 = vmatpush.bf16.msra.mxu0 %v534
    %548 = vmatpush.bf16.msra.mxu0 %v533
    %549 = vmatpush.bf16.msra.mxu0 %v532
    %550 = vmatpush.bf16.msra.mxu0 %v531
    %551 = vmatpush.bf16.msra.mxu0 %v530
    %552 = vmatpush.bf16.msra.mxu0 %v529
    %553 = vmatmul.bf16.gmra.mxu0 %v476
    %v554 = vpop.f32.mrf.mxu0
    %v555 = vadd.f32 %v495, %v554
    %v556 = vpop.f32.mrf.mxu0
    %557 = vdwg.mxu0
    %v558 = vmax.f32 %v555, 0.0
    %559 = vst [vmem:[#allocation17] sm:$0xff] %v558
    %v560 = vld [vmem:[#allocation13] sm:$0xf]
    %v561 = vld [vmem:[#allocation13 + $0x4] sm:$0xf]
    %v562 = vld [vmem:[#allocation13 + $0x8] sm:$0xf]
    %v563 = vld [vmem:[#allocation13 + $0xc] sm:$0xf]
    %v564 = vld [vmem:[%s8] sm:$0x1]
    %v566 = vperm.slane %v564, 0
    %v572 = vunpack.c.l.b16 %v560
    %v573 = vunpack.c.l.b16 %v561
    %v574 = vunpack.c.l.b16 %v562
    %v575 = vunpack.c.l.b16 %v563
    %v576 = vpack.c.b16 %v573, %v572
    %v577 = vpack.c.b16 %v575, %v574
    %580 = vmatpush.bf16.msra.mxu0 0
    %581 = vmatpush.bf16.msra.mxu0 0
    %582 = vmatpush.bf16.msra.mxu0 0
    %583 = vmatpush.bf16.msra.mxu0 0
    %584 = vmatpush.bf16.msra.mxu0 0
    %585 = vmatpush.bf16.msra.mxu0 0
    %586 = vmatpush.bf16.msra.mxu0 %v577
    %587 = vmatpush.bf16.msra.mxu0 %v576
    %588 = vmatmul.bf16.gmra.mxu0 %v207
    %v589 = vpop.f32.mrf.mxu0
    %v590 = vadd.f32 %v566, %v589
    %v591 = vpop.f32.mrf.mxu0
    %592 = vdwg.mxu0
    %v593 = vmax.f32 %v590, 0.0
    %v594 = vpack.c.bf16 %v593, %v593
    %v595 = vld [vmem:[#allocation14] sm:$0xf]
    %v596 = vld [vmem:[#allocation14 + $0x4] sm:$0xf]
    %v597 = vld [vmem:[#allocation14 + $0x8] sm:$0xf]
    %v598 = vld [vmem:[#allocation14 + $0xc] sm:$0xf]
    %v599 = vld [vmem:[#allocation14 + $0x10] sm:$0xf]
    %v600 = vld [vmem:[#allocation14 + $0x14] sm:$0xf]
    %v601 = vld [vmem:[#allocation14 + $0x18] sm:$0xf]
    %v602 = vld [vmem:[#allocation14 + $0x1c] sm:$0xf]
    %v603 = vld [vmem:[#allocation14 + $0x20] sm:$0xf]
    %v604 = vld [vmem:[#allocation14 + $0x24] sm:$0xf]
    %v605 = vld [vmem:[#allocation14 + $0x28] sm:$0xf]
    %v606 = vld [vmem:[#allocation14 + $0x2c] sm:$0xf]
    %v607 = vld [vmem:[#allocation14 + $0x30] sm:$0xf]
    %v608 = vld [vmem:[#allocation14 + $0x34] sm:$0xf]
    %v609 = vld [vmem:[#allocation14 + $0x38] sm:$0xf]
    %v610 = vld [vmem:[#allocation14 + $0x3c] sm:$0xf]
    %v611 = vld [vmem:[%s10] sm:$0x1]
    %v613 = vperm.slane %v611, 0
    %v631 = vunpack.c.l.b16 %v595
    %v632 = vunpack.c.l.b16 %v596
    %v633 = vunpack.c.l.b16 %v597
    %v634 = vunpack.c.l.b16 %v598
    %v635 = vunpack.c.l.b16 %v599
    %v636 = vunpack.c.l.b16 %v600
    %v637 = vunpack.c.l.b16 %v601
    %v638 = vunpack.c.l.b16 %v602
    %v639 = vunpack.c.l.b16 %v603
    %v640 = vunpack.c.l.b16 %v604
    %v641 = vunpack.c.l.b16 %v605
    %v642 = vunpack.c.l.b16 %v606
    %v643 = vunpack.c.l.b16 %v607
    %v644 = vunpack.c.l.b16 %v608
    %v645 = vunpack.c.l.b16 %v609
    %v646 = vunpack.c.l.b16 %v610
    %v647 = vpack.c.b16 %v632, %v631
    %v648 = vpack.c.b16 %v634, %v633
    %v649 = vpack.c.b16 %v636, %v635
    %v650 = vpack.c.b16 %v638, %v637
    %v651 = vpack.c.b16 %v640, %v639
    %v652 = vpack.c.b16 %v642, %v641
    %v653 = vpack.c.b16 %v644, %v643
    %v654 = vpack.c.b16 %v646, %v645
    %663 = vmatpush.bf16.msra.mxu0 %v654
    %664 = vmatpush.bf16.msra.mxu0 %v653
    %665 = vmatpush.bf16.msra.mxu0 %v652
    %666 = vmatpush.bf16.msra.mxu0 %v651
    %667 = vmatpush.bf16.msra.mxu0 %v650
    %668 = vmatpush.bf16.msra.mxu0 %v649
    %669 = vmatpush.bf16.msra.mxu0 %v648
    %670 = vmatpush.bf16.msra.mxu0 %v647
    %671 = vmatmul.bf16.gmra.mxu0 %v594
    %v672 = vpop.f32.mrf.mxu0
    %v673 = vadd.f32 %v613, %v672
    %v674 = vpop.f32.mrf.mxu0
    %675 = vdwg.mxu0
    %v676 = vmax.f32 %v673, 0.0
    %v677 = vpack.c.bf16 %v676, %v676
    %s678 = scalar_lea.vmem [#allocation14], 64
    %v679 = vld [vmem:[%s678] sm:$0xf]
    %v680 = vld [vmem:[%s678 + $0x4] sm:$0xf]
    %v681 = vld [vmem:[%s678 + $0x8] sm:$0xf]
    %v682 = vld [vmem:[%s678 + $0xc] sm:$0xf]
    %v683 = vld [vmem:[%s678 + $0x10] sm:$0xf]
    %v684 = vld [vmem:[%s678 + $0x14] sm:$0xf]
    %v685 = vld [vmem:[%s678 + $0x18] sm:$0xf]
    %v686 = vld [vmem:[%s678 + $0x1c] sm:$0xf]
    %v687 = vld [vmem:[%s678 + $0x20] sm:$0xf]
    %v688 = vld [vmem:[%s678 + $0x24] sm:$0xf]
    %v689 = vld [vmem:[%s678 + $0x28] sm:$0xf]
    %v690 = vld [vmem:[%s678 + $0x2c] sm:$0xf]
    %v691 = vld [vmem:[%s678 + $0x30] sm:$0xf]
    %v692 = vld [vmem:[%s678 + $0x34] sm:$0xf]
    %v693 = vld [vmem:[%s678 + $0x38] sm:$0xf]
    %v694 = vld [vmem:[%s678 + $0x3c] sm:$0xf]
    %s695 = scalar_lea.vmem %s10, 1
    %v696 = vld [vmem:[%s695] sm:$0x1]
    %v698 = vperm.slane %v696, 0
    %v716 = vunpack.c.l.b16 %v679
    %v717 = vunpack.c.l.b16 %v680
    %v718 = vunpack.c.l.b16 %v681
    %v719 = vunpack.c.l.b16 %v682
    %v720 = vunpack.c.l.b16 %v683
    %v721 = vunpack.c.l.b16 %v684
    %v722 = vunpack.c.l.b16 %v685
    %v723 = vunpack.c.l.b16 %v686
    %v724 = vunpack.c.l.b16 %v687
    %v725 = vunpack.c.l.b16 %v688
    %v726 = vunpack.c.l.b16 %v689
    %v727 = vunpack.c.l.b16 %v690
    %v728 = vunpack.c.l.b16 %v691
    %v729 = vunpack.c.l.b16 %v692
    %v730 = vunpack.c.l.b16 %v693
    %v731 = vunpack.c.l.b16 %v694
    %v732 = vpack.c.b16 %v717, %v716
    %v733 = vpack.c.b16 %v719, %v718
    %v734 = vpack.c.b16 %v721, %v720
    %v735 = vpack.c.b16 %v723, %v722
    %v736 = vpack.c.b16 %v725, %v724
    %v737 = vpack.c.b16 %v727, %v726
    %v738 = vpack.c.b16 %v729, %v728
    %v739 = vpack.c.b16 %v731, %v730
    %748 = vmatpush.bf16.msra.mxu0 %v739
    %749 = vmatpush.bf16.msra.mxu0 %v738
    %750 = vmatpush.bf16.msra.mxu0 %v737
    %751 = vmatpush.bf16.msra.mxu0 %v736
    %752 = vmatpush.bf16.msra.mxu0 %v735
    %753 = vmatpush.bf16.msra.mxu0 %v734
    %754 = vmatpush.bf16.msra.mxu0 %v733
    %755 = vmatpush.bf16.msra.mxu0 %v732
    %756 = vmatmul.bf16.gmra.mxu0 %v677
    %v757 = vpop.f32.mrf.mxu0
    %v758 = vadd.f32 %v698, %v757
    %v759 = vpop.f32.mrf.mxu0
    %760 = vdwg.mxu0
    %v761 = vmax.f32 %v758, 0.0
    %v762 = vpack.c.bf16 %v761, %v761
    %s763 = scalar_lea.vmem [#allocation14], 128
    %v764 = vld [vmem:[%s763] sm:$0xf]
    %v765 = vld [vmem:[%s763 + $0x4] sm:$0xf]
    %v766 = vld [vmem:[%s763 + $0x8] sm:$0xf]
    %v767 = vld [vmem:[%s763 + $0xc] sm:$0xf]
    %v768 = vld [vmem:[%s763 + $0x10] sm:$0xf]
    %v769 = vld [vmem:[%s763 + $0x14] sm:$0xf]
    %v770 = vld [vmem:[%s763 + $0x18] sm:$0xf]
    %v771 = vld [vmem:[%s763 + $0x1c] sm:$0xf]
    %v772 = vld [vmem:[%s763 + $0x20] sm:$0xf]
    %v773 = vld [vmem:[%s763 + $0x24] sm:$0xf]
    %v774 = vld [vmem:[%s763 + $0x28] sm:$0xf]
    %v775 = vld [vmem:[%s763 + $0x2c] sm:$0xf]
    %v776 = vld [vmem:[%s763 + $0x30] sm:$0xf]
    %v777 = vld [vmem:[%s763 + $0x34] sm:$0xf]
    %v778 = vld [vmem:[%s763 + $0x38] sm:$0xf]
    %v779 = vld [vmem:[%s763 + $0x3c] sm:$0xf]
    %s780 = scalar_lea.vmem %s10, 2
    %v781 = vld [vmem:[%s780] sm:$0x1]
    %v783 = vperm.slane %v781, 0
    %v801 = vunpack.c.l.b16 %v764
    %v802 = vunpack.c.l.b16 %v765
    %v803 = vunpack.c.l.b16 %v766
    %v804 = vunpack.c.l.b16 %v767
    %v805 = vunpack.c.l.b16 %v768
    %v806 = vunpack.c.l.b16 %v769
    %v807 = vunpack.c.l.b16 %v770
    %v808 = vunpack.c.l.b16 %v771
    %v809 = vunpack.c.l.b16 %v772
    %v810 = vunpack.c.l.b16 %v773
    %v811 = vunpack.c.l.b16 %v774
    %v812 = vunpack.c.l.b16 %v775
    %v813 = vunpack.c.l.b16 %v776
    %v814 = vunpack.c.l.b16 %v777
    %v815 = vunpack.c.l.b16 %v778
    %v816 = vunpack.c.l.b16 %v779
    %v817 = vpack.c.b16 %v802, %v801
    %v818 = vpack.c.b16 %v804, %v803
    %v819 = vpack.c.b16 %v806, %v805
    %v820 = vpack.c.b16 %v808, %v807
    %v821 = vpack.c.b16 %v810, %v809
    %v822 = vpack.c.b16 %v812, %v811
    %v823 = vpack.c.b16 %v814, %v813
    %v824 = vpack.c.b16 %v816, %v815
    %833 = vmatpush.bf16.msra.mxu0 %v824
    %834 = vmatpush.bf16.msra.mxu0 %v823
    %835 = vmatpush.bf16.msra.mxu0 %v822
    %836 = vmatpush.bf16.msra.mxu0 %v821
    %837 = vmatpush.bf16.msra.mxu0 %v820
    %838 = vmatpush.bf16.msra.mxu0 %v819
    %839 = vmatpush.bf16.msra.mxu0 %v818
    %840 = vmatpush.bf16.msra.mxu0 %v817
    %841 = vmatmul.bf16.gmra.mxu0 %v762
    %v842 = vpop.f32.mrf.mxu0
    %v843 = vadd.f32 %v783, %v842
    %v844 = vpop.f32.mrf.mxu0
    %845 = vdwg.mxu0
    %v846 = vmax.f32 %v843, 0.0
    %v847 = vpack.c.bf16 %v846, %v846
    %v848 = vld [vmem:[#allocation16] sm:$0xf]
    %v849 = vld [vmem:[#allocation16 + $0x4] sm:$0xf]
    %v850 = vld [vmem:[#allocation16 + $0x8] sm:$0xf]
    %v851 = vld [vmem:[#allocation16 + $0xc] sm:$0xf]
    %v852 = vld [vmem:[#allocation16 + $0x10] sm:$0xf]
    %v853 = vld [vmem:[#allocation16 + $0x14] sm:$0xf]
    %v854 = vld [vmem:[#allocation16 + $0x18] sm:$0xf]
    %v855 = vld [vmem:[#allocation16 + $0x1c] sm:$0xf]
    %v856 = vld [vmem:[#allocation16 + $0x20] sm:$0xf]
    %v857 = vld [vmem:[#allocation16 + $0x24] sm:$0xf]
    %v858 = vld [vmem:[#allocation16 + $0x28] sm:$0xf]
    %v859 = vld [vmem:[#allocation16 + $0x2c] sm:$0xf]
    %v860 = vld [vmem:[#allocation16 + $0x30] sm:$0xf]
    %v861 = vld [vmem:[#allocation16 + $0x34] sm:$0xf]
    %v862 = vld [vmem:[#allocation16 + $0x38] sm:$0xf]
    %v863 = vld [vmem:[#allocation16 + $0x3c] sm:$0xf]
    %v864 = vld [vmem:[%s12] sm:$0x1]
    %v866 = vperm.slane %v864, 0
    %v884 = vunpack.c.l.b16 %v848
    %v885 = vunpack.c.l.b16 %v849
    %v886 = vunpack.c.l.b16 %v850
    %v887 = vunpack.c.l.b16 %v851
    %v888 = vunpack.c.l.b16 %v852
    %v889 = vunpack.c.l.b16 %v853
    %v890 = vunpack.c.l.b16 %v854
    %v891 = vunpack.c.l.b16 %v855
    %v892 = vunpack.c.l.b16 %v856
    %v893 = vunpack.c.l.b16 %v857
    %v894 = vunpack.c.l.b16 %v858
    %v895 = vunpack.c.l.b16 %v859
    %v896 = vunpack.c.l.b16 %v860
    %v897 = vunpack.c.l.b16 %v861
    %v898 = vunpack.c.l.b16 %v862
    %v899 = vunpack.c.l.b16 %v863
    %v900 = vpack.c.b16 %v885, %v884
    %v901 = vpack.c.b16 %v887, %v886
    %v902 = vpack.c.b16 %v889, %v888
    %v903 = vpack.c.b16 %v891, %v890
    %v904 = vpack.c.b16 %v893, %v892
    %v905 = vpack.c.b16 %v895, %v894
    %v906 = vpack.c.b16 %v897, %v896
    %v907 = vpack.c.b16 %v899, %v898
    %916 = vmatpush.bf16.msra.mxu0 %v907
    %917 = vmatpush.bf16.msra.mxu0 %v906
    %918 = vmatpush.bf16.msra.mxu0 %v905
    %919 = vmatpush.bf16.msra.mxu0 %v904
    %920 = vmatpush.bf16.msra.mxu0 %v903
    %921 = vmatpush.bf16.msra.mxu0 %v902
    %922 = vmatpush.bf16.msra.mxu0 %v901
    %923 = vmatpush.bf16.msra.mxu0 %v900
    %924 = vmatmul.bf16.gmra.mxu0 %v847
    %v925 = vpop.f32.mrf.mxu0
    %v926 = vadd.f32 %v866, %v925
    %v927 = vpop.f32.mrf.mxu0
    %928 = vdwg.mxu0
    %v929 = vmax.f32 %v926, 0.0
    %930 = vst [vmem:[#allocation18] sm:$0xff] %v929
    // Predicated region
    $region90: #{tpu_custom_call.1} parent=1 // pred_check
      _
    $region91: #{tpu_custom_call.1} parent=1 // pred_check_branch
      %932 = sbr.rel (0) target = $region93
    $region92: #{tpu_custom_call.1} parent=1 // pred_region
      %934 = vsyncadd [#allocation4], 0
      %s936 = sshll.u32 [#allocation17], 4
      %s937 = int_to_ptr.vmem [resolvable:$true] %s936
      %s938 = sshll.u32 %s13, 4
      %s939 = int_to_ptr.hbm [resolvable:$true] %s938
      %941 = dma.vmem_to_hbm [thread:$0]  %s937, 128, %s939, [#allocation4]
    $region93: #{tpu_custom_call.1} parent=1 // pred_fallthru
      _
    // Predicated region
    $region94: #{tpu_custom_call.1} parent=1 // pred_check
      _
    $region95: #{tpu_custom_call.1} parent=1 // pred_check_branch
      %943 = sbr.rel (0) target = $region97
    $region96: #{tpu_custom_call.1} parent=1 // pred_region
      %945 = vsyncadd [#allocation19], 0
      %s947 = sshll.u32 [#allocation18], 4
      %s948 = int_to_ptr.vmem [resolvable:$true] %s947
      %s949 = sshll.u32 %s14, 4
      %s950 = int_to_ptr.hbm [resolvable:$true] %s949
      %952 = dma.vmem_to_hbm [thread:$0]  %s948, 128, %s950, [#allocation19]
    $region97: #{tpu_custom_call.1} parent=1 // pred_fallthru
      _
    // Predicated region
    $region98: #{tpu_custom_call.1} parent=1 // pred_check
      _
    $region99: #{tpu_custom_call.1} parent=1 // pred_check_branch
      %954 = sbr.rel (0) target = $region101
    $region100: #{tpu_custom_call.1} parent=1 // pred_region
      %956 = dma.done [#allocation4], 128
    $region101: #{tpu_custom_call.1} parent=1 // pred_fallthru
      _
    // Predicated region
    $region102: #{tpu_custom_call.1} parent=1 // pred_check
      _
    $region103: #{tpu_custom_call.1} parent=1 // pred_check_branch
      %958 = sbr.rel (0) target = $region105
    $region104: #{tpu_custom_call.1} parent=1 // pred_region
      %960 = dma.done [#allocation19], 128
    $region105: #{tpu_custom_call.1} parent=1 // pred_fallthru
      _
    %961 = vsyncpa [#allocation3], 1
    %962 = vsyncpa [#allocation6], 1
    %963 = vsyncpa [#allocation9], 1
    %964 = vsyncpa [#allocation12], 1
    %965 = vsyncpa [#allocation15], 1
    %966 = vsyncpa [#allocation4], 1
    %967 = vsyncpa [#allocation19], 1

</llo_original>
